<compile_context>
chip_gen: v7x
topology: tpu7x:2x2x1
jax: 0.10.0
libtpu: 0.0.40
codegen_flags: <defaults>
</compile_context>

<pallas_src>
import math
import functools

import jax
import jax.numpy as jnp
import numpy as np
from jax.experimental import pallas as pl
from jax.experimental.pallas import tpu as pltpu


# Set True to use the EUP approx reciprocal for the softmax denominator
# (nearly free, but slightly loosens the match against the f32 reference).
APPROX_RECIPROCAL = False


def _vmem_capacity_bytes():
    try:
        cap = getattr(pltpu.get_tpu_info(), "vmem_capacity_bytes", None)
        if cap:
            return int(cap)
    except Exception:
        pass
    return 128 * 1024 * 1024


_VMEM_CAP = _vmem_capacity_bytes()
# Leave headroom: ~48 MiB on 64 MiB parts (v7x), ~96 MiB on 128 MiB parts.
VMEM_LIMIT_BYTES = int(min(_VMEM_CAP * 3 // 4, 96 * 1024 * 1024))


def _linear_tile_caps():
    if _VMEM_CAP <= 64 * 1024 * 1024:      # v7x-class part (64 MiB VMEM)
        return 256, 256, 512
    return 512, 512, 1024                   # v5e / v6e (128 MiB VMEM)


def _attn_tile_caps():
    # Returning the full (tq, S) weights block keeps an S-scaled slab resident;
    # keep tq smaller on 64 MiB parts.
    if _VMEM_CAP <= 64 * 1024 * 1024:
        return 128, 256
    return 256, 256


def _pick_tile(dim, cap, align=128):
    """Largest tile <= cap that evenly divides dim (prefer multiples of align)."""
    if dim <= cap:
        return dim
    start = cap - (cap % align)
    for t in range(start, 0, -align):
        if t > 0 and dim % t == 0:
            return t
    for t in range(cap, 0, -1):
        if dim % t == 0:
            return t
    return dim


# ----------------------------------------------------------------------------
# Tiled linear projection (q/k/v/o)
# ----------------------------------------------------------------------------
def _linear_kernel(x_ref, w_ref, o_ref, acc_ref):
    @pl.when(pl.program_id(2) == 0)
    def _init():
        acc_ref[...] = jnp.zeros(acc_ref.shape, dtype=jnp.float32)

    # Native-dtype operands (bf16 hits the bf16 MXU path); f32 accumulation.
    acc_ref[...] += jnp.dot(x_ref[...], w_ref[...],
                            preferred_element_type=jnp.float32)

    @pl.when(pl.program_id(2) == pl.num_programs(2) - 1)
    def _finalize():
        o_ref[...] = acc_ref[...].astype(o_ref.dtype)


def pallas_linear(x2d, w):
    """x2d: [M, K], w: [K, N] -> [M, N]  (no bias; attention_bias=False)."""
    M, K = x2d.shape
    _, N = w.shape
    tm_cap, tn_cap, tk_cap = _linear_tile_caps()
    tm = _pick_tile(M, tm_cap)
    tn = _pick_tile(N, tn_cap)
    tk = _pick_tile(K, tk_cap)
    grid = (M // tm, N // tn, K // tk)
    return pl.pallas_call(
        _linear_kernel,
        grid=grid,
        in_specs=[
            pl.BlockSpec((tm, tk), lambda i, j, k: (i, k)),
            pl.BlockSpec((tk, tn), lambda i, j, k: (k, j)),
        ],
        out_specs=pl.BlockSpec((tm, tn), lambda i, j, k: (i, j)),
        out_shape=jax.ShapeDtypeStruct((M, N), x2d.dtype),
        scratch_shapes=[pltpu.VMEM((tm, tn), jnp.float32)],
        compiler_params=pltpu.CompilerParams(
            dimension_semantics=("parallel", "parallel", "arbitrary"),
            vmem_limit_bytes=VMEM_LIMIT_BYTES),
    )(x2d, w)


# ----------------------------------------------------------------------------
# Flash-style attention with fused RoPE (online softmax over KV tiles)
# ----------------------------------------------------------------------------
def _rotate_half_like(xf, head_dim, use_roll):
    """[x1, x2] -> [x2, x1]; the rotate_half sign is folded into sin_signed."""
    half = head_dim // 2
    if use_roll:
        # XLU lane rotation (off the MXU/VALU path).
        return pltpu.roll(xf, shift=half, axis=-1)
    # Small head_dim (< 128 lanes): 0/1 permutation matmul is the layout-safe path.
    row = jax.lax.broadcasted_iota(jnp.int32, (head_dim, head_dim), 0)
    col = jax.lax.broadcasted_iota(jnp.int32, (head_dim, head_dim), 1)
    perm = (jnp.where(row == col + half, 1.0, 0.0)
            + jnp.where(row == col - half, 1.0, 0.0)).astype(jnp.float32)
    return jnp.dot(xf, perm, preferred_element_type=jnp.float32)


def _apply_rope(x, cos, sin_signed, head_dim, use_roll):
    xf = x.astype(jnp.float32)
    xr = _rotate_half_like(xf, head_dim, use_roll)
    return xf * cos.astype(jnp.float32) + xr * sin_signed.astype(jnp.float32)


def _flash_attn_kernel(q_ref, k_ref, v_ref, mask_ref,
                       cos_q_ref, sin_q_ref, cos_k_ref, sin_k_ref,
                       o_ref, w_ref,
                       m_ref, l_ref, acc_ref, mblk_ref, qrot_ref,
                       *, sm_scale, block_kv, num_kv_blocks, head_dim,
                       use_roll, approx_recip):
    ki = pl.program_id(3)

    @pl.when(ki == 0)
    def _init():
        m_ref[...] = jnp.full(m_ref.shape, -jnp.inf, dtype=jnp.float32)
        l_ref[...] = jnp.zeros(l_ref.shape, dtype=jnp.float32)
        acc_ref[...] = jnp.zeros(acc_ref.shape, dtype=jnp.float32)
        mblk_ref[...] = jnp.zeros(mblk_ref.shape, dtype=jnp.float32)
        # RoPE on the Q tile once per (b, q-tile, head); stored in the native
        # dtype so bf16 inputs keep the bf16 MXU rate.
        qrot_ref[...] = _apply_rope(q_ref[0, 0], cos_q_ref[0], sin_q_ref[0],
                                    head_dim, use_roll).astype(qrot_ref.dtype)

    q = qrot_ref[...]                                                  # (tq, D)
    k = _apply_rope(k_ref[0, 0], cos_k_ref[0], sin_k_ref[0],
                    head_dim, use_roll).astype(k_ref.dtype)            # (tk, D)
    v = v_ref[0, 0]                                                    # (tk, D)

    col0 = pl.multiple_of(ki * block_kv, block_kv)
    mask = mask_ref[0, 0, :, pl.ds(col0, block_kv)].astype(jnp.float32)

    # QK^T: transpose consumed by the MXU (no k.T materialization), native
    # dtype operands, f32 accumulation.
    s = jax.lax.dot_general(q, k, dimension_numbers=(((1,), (1,)), ((), ())),
                            preferred_element_type=jnp.float32)
    s = s * sm_scale + mask

    # Online softmax update (flash).
    m_prev = m_ref[...]
    m_new = jnp.maximum(m_prev, jnp.max(s, axis=-1, keepdims=True))
    alpha = jnp.exp(m_prev - m_new)
    p = jnp.exp(s - m_new)                      # the ONLY exp over the scores
    l_ref[...] = alpha * l_ref[...] + jnp.sum(p, axis=-1, keepdims=True)
    acc_ref[...] = alpha * acc_ref[...] + jnp.dot(
        p.astype(v.dtype), v, preferred_element_type=jnp.float32)
    m_ref[...] = m_new

    # Stage un-normalized block probabilities directly in the (VMEM-resident)
    # weights output block; remember this block's running max for the rescale.
    w_ref[0, 0, :, pl.ds(col0, block_kv)] = p.astype(w_ref.dtype)
    lane = jax.lax.broadcasted_iota(jnp.int32, mblk_ref.shape, 1)
    mblk_ref[...] = jnp.where(lane == ki, m_new, mblk_ref[...])

    @pl.when(ki == pl.num_programs(3) - 1)
    def _finalize():
        l = l_ref[...]
        inv_l = pl.reciprocal(l, approx=True) if approx_recip else 1.0 / l
        o_ref[0, 0] = (acc_ref[...] * inv_l).astype(o_ref.dtype)
        # softmax_j = p_j * exp(m_block_j - m_final) / l   (no second exp of s)
        scale = jnp.exp(mblk_ref[...] - m_ref[...]) * inv_l        # (tq, n_kv)
        for j in range(num_kv_blocks):
            c = j * block_kv
            blk = w_ref[0, 0, :, c:c + block_kv].astype(jnp.float32)
            w_ref[0, 0, :, c:c + block_kv] = (blk * scale[:, j:j + 1]
                                              ).astype(w_ref.dtype)


def pallas_flash_attention(q, k, v, mask, cos, sin_signed, n_rep):
    """q: [B,H,S,D]; k/v: [B,KVH,S,D]; mask: [B,1,S,S] additive; cos/sin: [B,S,D]."""
    B, H, S, D = q.shape
    tq_cap, tk_cap = _attn_tile_caps()
    tq = _pick_tile(S, tq_cap)
    tk = _pick_tile(S, tk_cap)
    n_kv = S // tk
    kernel = functools.partial(
        _flash_attn_kernel, sm_scale=1.0 / math.sqrt(D), block_kv=tk,
        num_kv_blocks=n_kv, head_dim=D, use_roll=(D % 128 == 0),
        approx_recip=APPROX_RECIPROCAL)

    # Grid order (b, q-tile, head, kv-tile): heads sit inside the q-tile so the
    # (tq, S) mask block stays VMEM-resident across all H heads (H x fewer mask
    # HBM reads); the kv-tile axis is innermost for the online-softmax state.
    grid = (B, S // tq, H, n_kv)
    out, w = pl.pallas_call(
        kernel,
        grid=grid,
        in_specs=[
            pl.BlockSpec((1, 1, tq, D), lambda b, qi, h, ki: (b, h, qi, 0)),
            pl.BlockSpec((1, 1, tk, D), lambda b, qi, h, ki: (b, h // n_rep, ki, 0)),
            pl.BlockSpec((1, 1, tk, D), lambda b, qi, h, ki: (b, h // n_rep, ki, 0)),
            pl.BlockSpec((1, 1, tq, S), lambda b, qi, h, ki: (b, 0, qi, 0)),
            pl.BlockSpec((1, tq, D), lambda b, qi, h, ki: (b, qi, 0)),   # cos (Q rows)
            pl.BlockSpec((1, tq, D), lambda b, qi, h, ki: (b, qi, 0)),   # sin (Q rows)
            pl.BlockSpec((1, tk, D), lambda b, qi, h, ki: (b, ki, 0)),   # cos (K rows)
            pl.BlockSpec((1, tk, D), lambda b, qi, h, ki: (b, ki, 0)),   # sin (K rows)
        ],
        out_specs=[
            pl.BlockSpec((1, 1, tq, D), lambda b, qi, h, ki: (b, h, qi, 0)),
            pl.BlockSpec((1, 1, tq, S), lambda b, qi, h, ki: (b, h, qi, 0)),
        ],
        out_shape=[
            jax.ShapeDtypeStruct((B, H, S, D), q.dtype),
            jax.ShapeDtypeStruct((B, H, S, S), q.dtype),
        ],
        scratch_shapes=[
            pltpu.VMEM((tq, 1), jnp.float32),      # running max
            pltpu.VMEM((tq, 1), jnp.float32),      # running sum
            pltpu.VMEM((tq, D), jnp.float32),      # output accumulator
            pltpu.VMEM((tq, n_kv), jnp.float32),   # per-KV-block max (weight rescale)
            pltpu.VMEM((tq, D), q.dtype),          # RoPE'd Q tile
        ],
        compiler_params=pltpu.CompilerParams(
            dimension_semantics=("parallel", "parallel", "parallel", "arbitrary"),
            vmem_limit_bytes=VMEM_LIMIT_BYTES),
    )(q, k, v, mask, cos, sin_signed, cos, sin_signed)
    return out, w


# ----------------------------------------------------------------------------
# Module wrapper
# ----------------------------------------------------------------------------
class GemmaAttentionPallas:
    def __init__(self, hidden_size, num_heads, head_dim, num_kv_heads,
                 rope_theta=10000.0, key=jax.random.PRNGKey(0)):
        assert hidden_size % num_heads == 0
        self.hidden_size = hidden_size
        self.num_heads = num_heads
        self.head_dim = head_dim
        self.num_kv_heads = num_kv_heads
        self.n_rep = num_heads // num_kv_heads
        self.rope_theta = rope_theta

        kq, kk, kv, ko = jax.random.split(key, 4)
        scale = 0.02
        # stored pre-transposed: [in_features, out_features]
        self.wq = (scale * jax.random.normal(
            kq, (hidden_size, num_heads * head_dim))).astype(jnp.float32)
        self.wk = (scale * jax.random.normal(
            kk, (hidden_size, num_kv_heads * head_dim))).astype(jnp.float32)
        self.wv = (scale * jax.random.normal(
            kv, (hidden_size, num_kv_heads * head_dim))).astype(jnp.float32)
        self.wo = (scale * jax.random.normal(
            ko, (num_heads * head_dim, hidden_size))).astype(jnp.float32)

    def _rotary(self, position_ids, dtype):
        D = self.head_dim
        inv_freq = 1.0 / (self.rope_theta **
                          (jnp.arange(0, D, 2, dtype=jnp.float32) / D))
        freqs = position_ids.astype(jnp.float32)[:, :, None] * inv_freq[None, None, :]
        emb = jnp.concatenate([freqs, freqs], axis=-1)          # [B, S, D]
        return jnp.cos(emb).astype(dtype), jnp.sin(emb).astype(dtype)

    def __call__(self, hidden_states, attention_mask, position_ids):
        B, S, _ = hidden_states.shape
        H, KVH, D = self.num_heads, self.num_kv_heads, self.head_dim
        half = D // 2

        x2d = hidden_states.reshape(B * S, self.hidden_size)
        q = pallas_linear(x2d, self.wq).reshape(B, S, H, D).transpose(0, 2, 1, 3)
        k = pallas_linear(x2d, self.wk).reshape(B, S, KVH, D).transpose(0, 2, 1, 3)
        v = pallas_linear(x2d, self.wv).reshape(B, S, KVH, D).transpose(0, 2, 1, 3)

        cos, sin = self._rotary(position_ids, hidden_states.dtype)
        # rotate_half sign folded into sin: [-sin_lo, sin_hi]; RoPE itself is
        # applied inside the attention kernel (no extra Q/K HBM round trip).
        sin_signed = jnp.concatenate([-sin[..., :half], sin[..., half:]], axis=-1)

        attn_out, attn_w = pallas_flash_attention(
            q, k, v, attention_mask, cos, sin_signed, self.n_rep)

        attn_out = attn_out.transpose(0, 2, 1, 3).reshape(B * S, H * D)
        out = pallas_linear(attn_out, self.wo).reshape(B, S, self.hidden_size)
        # attention_dropout p=0.0 / eval mode -> identity.
        return out, attn_w


# ----------------------------------------------------------------------------
# Pure-JAX reference (mirrors PyTorch semantics)
# ----------------------------------------------------------------------------
def reference_forward(mod, hidden_states, attention_mask, position_ids):
    B, S, _ = hidden_states.shape
    H, KVH, D = mod.num_heads, mod.num_kv_heads, mod.head_dim

    q = (hidden_states @ mod.wq).reshape(B, S, H, D).transpose(0, 2, 1, 3)
    k = (hidden_states @ mod.wk).reshape(B, S, KVH, D).transpose(0, 2, 1, 3)
    v = (hidden_states @ mod.wv).reshape(B, S, KVH, D).transpose(0, 2, 1, 3)

    cos, sin = mod._rotary(position_ids, hidden_states.dtype)
    cos_e, sin_e = cos[:, None], sin[:, None]

    def rotate_half(x):
        return jnp.concatenate([-x[..., D // 2:], x[..., :D // 2]], axis=-1)

    q = q * cos_e + rotate_half(q) * sin_e
    k = k * cos_e + rotate_half(k) * sin_e

    k = jnp.repeat(k, mod.n_rep, axis=1)
    v = jnp.repeat(v, mod.n_rep, axis=1)

    scores = jnp.einsum('bhqd,bhkd->bhqk', q, k) / math.sqrt(D)
    scores = scores + attention_mask
    w = jax.nn.softmax(scores.astype(jnp.float32), axis=-1).astype(q.dtype)
    out = jnp.einsum('bhqk,bhkd->bhqd', w, v)
    out = out.transpose(0, 2, 1, 3).reshape(B, S, H * D) @ mod.wo
    return out, w


# ----------------------------------------------------------------------------
if __name__ == "__main__":
    B, S = 2, 8
    hidden_size, num_heads, head_dim, num_kv_heads = 32, 4, 8, 2

    root = jax.random.PRNGKey(0)
    k_w, k_x = jax.random.split(root)

    mod = GemmaAttentionPallas(hidden_size, num_heads, head_dim,
                               num_kv_heads, rope_theta=10000.0, key=k_w)

    hidden_states = jax.random.normal(k_x, (B, S, hidden_size), dtype=jnp.float32)
    position_ids = jnp.broadcast_to(jnp.arange(S, dtype=jnp.int32)[None, :], (B, S))

    # additive causal mask [B, 1, S, S]
    causal = jnp.tril(jnp.ones((S, S), dtype=bool))
    attention_mask = jnp.where(causal, 0.0, -1e9).astype(jnp.float32)
    attention_mask = jnp.broadcast_to(attention_mask[None, None], (B, 1, S, S))

    out, attn_w = mod(hidden_states, attention_mask, position_ids)
    out = jax.block_until_ready(out)
    attn_w = jax.block_until_ready(attn_w)

    ref_out, ref_w = reference_forward(mod, hidden_states, attention_mask, position_ids)
    np.testing.assert_allclose(np.asarray(out), np.asarray(ref_out), rtol=1e-4, atol=1e-5)
    np.testing.assert_allclose(np.asarray(attn_w), np.asarray(ref_w), rtol=1e-4, atol=1e-5)

    print("KERNEL_OK")
</pallas_src>

<mosaic_0001>
module attributes {stable_mosaic.version = 11 : i64} {
  func.func @_linear_kernel(%arg0: i32, %arg1: i32, %arg2: i32, %arg3: memref<16x32xf32, #tpu.memory_space<vmem>>, %arg4: memref<32x32xf32, #tpu.memory_space<vmem>>, %arg5: memref<16x32xf32, #tpu.memory_space<vmem>>, %arg6: memref<16x32xf32, #tpu.memory_space<vmem>>) attributes {dimension_semantics = [#tpu.dimension_semantics<parallel>, #tpu.dimension_semantics<parallel>, #tpu.dimension_semantics<arbitrary>], iteration_bounds = array<i64: 1, 1, 1>, scalar_prefetch = 0 : i64, scratch_operands = 1 : i64, tpu.core_type = #tpu.core_type<tc>, window_params = [{transform_indices = @transform_0, window_bounds = array<i64: 16, 32>}, {transform_indices = @transform_1, window_bounds = array<i64: 32, 32>}, {transform_indices = @transform_2, window_bounds = array<i64: 16, 32>}]} {
    %c0_i32 = arith.constant 0 : i32
    %0 = arith.cmpi eq, %arg2, %c0_i32 : i32
    %1 = arith.extui %0 : i1 to i32
    %c0_i32_0 = arith.constant 0 : i32
    %2 = arith.cmpi ne, %1, %c0_i32_0 : i32
    scf.if %2 {
      %cst_10 = arith.constant 0.000000e+00 : f32
      %12 = vector.broadcast %cst_10 : f32 to vector<16x32xf32>
      %c0_11 = arith.constant 0 : index
      %c0_12 = arith.constant 0 : index
      %13 = vector.load %arg6[%c0_11, %c0_12] : memref<16x32xf32, #tpu.memory_space<vmem>>, vector<16x32xf32>
      tpu.vector_store %arg6[%c0_11, %c0_12], %12 {strides = array<i32>} : memref<16x32xf32, #tpu.memory_space<vmem>>, vector<16x32xf32>,
    } else {
    }
    %c0 = arith.constant 0 : index
    %c0_1 = arith.constant 0 : index
    %3 = vector.load %arg6[%c0, %c0_1] : memref<16x32xf32, #tpu.memory_space<vmem>>, vector<16x32xf32>
    %c0_2 = arith.constant 0 : index
    %c0_3 = arith.constant 0 : index
    %4 = vector.load %arg3[%c0_2, %c0_3] : memref<16x32xf32, #tpu.memory_space<vmem>>, vector<16x32xf32>
    %c0_4 = arith.constant 0 : index
    %c0_5 = arith.constant 0 : index
    %5 = vector.load %arg4[%c0_4, %c0_5] : memref<32x32xf32, #tpu.memory_space<vmem>>, vector<32x32xf32>
    %cst = arith.constant dense<0.000000e+00> : vector<16x32xf32>
    %6 = tpu.matmul %4, %5, %cst {dimension_numbers = #tpu.dot_dimension_numbers<[1], [0], [0], [1], [0, 0, 1, 1], [], []>} : vector<16x32xf32>, vector<32x32xf32>, vector<16x32xf32> -> vector<16x32xf32>
    %7 = arith.addf %3, %6 : vector<16x32xf32>
    %c0_6 = arith.constant 0 : index
    %c0_7 = arith.constant 0 : index
    %8 = vector.load %arg6[%c0_6, %c0_7] : memref<16x32xf32, #tpu.memory_space<vmem>>, vector<16x32xf32>
    tpu.vector_store %arg6[%c0_6, %c0_7], %7 {strides = array<i32>} : memref<16x32xf32, #tpu.memory_space<vmem>>, vector<16x32xf32>,
    %c0_i32_8 = arith.constant 0 : i32
    %9 = arith.cmpi eq, %arg2, %c0_i32_8 : i32
    %10 = arith.extui %9 : i1 to i32
    %c0_i32_9 = arith.constant 0 : i32
    %11 = arith.cmpi ne, %10, %c0_i32_9 : i32
    scf.if %11 {
      %c0_10 = arith.constant 0 : index
      %c0_11 = arith.constant 0 : index
      %12 = vector.load %arg6[%c0_10, %c0_11] : memref<16x32xf32, #tpu.memory_space<vmem>>, vector<16x32xf32>
      %c0_12 = arith.constant 0 : index
      %c0_13 = arith.constant 0 : index
      %13 = vector.load %arg5[%c0_12, %c0_13] : memref<16x32xf32, #tpu.memory_space<vmem>>, vector<16x32xf32>
      tpu.vector_store %arg5[%c0_12, %c0_13], %12 {strides = array<i32>} : memref<16x32xf32, #tpu.memory_space<vmem>>, vector<16x32xf32>,
    } else {
    }
    return
  }
  func.func @transform_0(%arg0: i32, %arg1: i32, %arg2: i32) -> (i32, i32) {
    %c0_i32 = arith.constant 0 : i32
    return %arg0, %arg2 : i32, i32
  }
  func.func @transform_1(%arg0: i32, %arg1: i32, %arg2: i32) -> (i32, i32) {
    %c0_i32 = arith.constant 0 : i32
    return %arg2, %arg1 : i32, i32
  }
  func.func @transform_2(%arg0: i32, %arg1: i32, %arg2: i32) -> (i32, i32) {
    %c0_i32 = arith.constant 0 : i32
    return %arg0, %arg1 : i32, i32
  }
}

</mosaic_0001>

<llo_original>
// kernel: tpu_custom_call.1
$region0: #{tpu_custom_call.1}
  #allocation0 [shape = 'u32[]', space=smem, size = 0x4, offset = 0x4, fixed_abs, tag = 'smem constant byte address 0x4 - core index']
  #allocation1 [shape = 'u32[144,128]{1,0:T(1,128)}', space=vmem, size = 0x12000, scoped, tag = 'internal scratch']
  #allocation2 [shape = 'f32[16,32]{1,0:T(8,128)}', space=vmem, size = 0x2000, scoped, tag = 'scratch operand']
  %s0 = inlined_call_operand.hbm [shape: f32[16,32], index: 0, kind: input, shape index: {}]
  %s1 = inlined_call_operand.hbm [shape: f32[32,32], index: 1, kind: input, shape index: {}]
  %s2 = inlined_call_operand.hbm [shape: f32[16,32], index: 2, kind: output, shape index: {}]
  %s3 = sld [smem:[#allocation0]]
  $region34: #{tpu_custom_call.1} parent=0
    _
  %s5 = ssub.s32 1, %s3
  %s6 = scalar_select 0, %s5, %s3
  $region1: #{tpu_custom_call.1} parent=0
    #allocation3 [shape = 'u8[8192]{0}', space=vmem, size = 0x2000, scoped, tag = 'input window, operand 0, single buffered']
    #allocation4 [shape = 's32[1]{0}', space=sflag, size = 0x4, scoped, tag = 'scoped memory for tpu_custom_call.1']
    #allocation5 [shape = 's32[1]{0}', space=sflag, size = 0x4, scoped, tag = 'scoped memory for tpu_custom_call.1']
    #allocation6 [shape = 'u8[16384]{0}', space=vmem, size = 0x4000, scoped, tag = 'input window, operand 1, single buffered']
    #allocation7 [shape = 's32[1]{0}', space=sflag, size = 0x4, scoped, tag = 'scoped memory for tpu_custom_call.1']
    #allocation8 [shape = 'u8[8192]{0}', space=vmem, size = 0x2000, scoped, tag = 'output window, operand 0, single buffered']
    %7 = vsyncpa [#allocation4], 0
    %8 = vsyncpa [#allocation7], 0
    %9 = vsyncpa [#allocation5], 0
    // Predicated region
    $region2: #{tpu_custom_call.1} parent=1 // pred_check
      _
    $region3: #{tpu_custom_call.1} parent=1 // pred_check_branch
      %11 = sbr.rel (0) target = $region5
    $region4: #{tpu_custom_call.1} parent=1 // pred_region
      %s13 = ssub.s32 256, 256
      %14 = vsyncadd [#allocation4], %s13
      %s15 = sshll.u32 [#allocation3], 4
      %s16 = int_to_ptr.vmem [resolvable:$true] %s15
      %21 = dma.hbm_to_vmem [thread:$0]  %s0, 256, %s16, [#allocation4], 128, 128, 8
    $region5: #{tpu_custom_call.1} parent=1 // pred_fallthru
      _
    // Predicated region
    $region6: #{tpu_custom_call.1} parent=1 // pred_check
      _
    $region7: #{tpu_custom_call.1} parent=1 // pred_check_branch
      %23 = sbr.rel (0) target = $region9
    $region8: #{tpu_custom_call.1} parent=1 // pred_region
      %s25 = ssub.s32 512, 512
      %26 = vsyncadd [#allocation7], %s25
      %s27 = sshll.u32 [#allocation6], 4
      %s28 = int_to_ptr.vmem [resolvable:$true] %s27
      %33 = dma.hbm_to_vmem [thread:$0]  %s1, 512, %s28, [#allocation7], 128, 128, 8
    $region9: #{tpu_custom_call.1} parent=1 // pred_fallthru
      _
    // Predicated region
    $region10: #{tpu_custom_call.1} parent=1 // pred_check
      _
    $region11: #{tpu_custom_call.1} parent=1 // pred_check_branch
      %35 = sbr.rel (0) target = $region13
    $region12: #{tpu_custom_call.1} parent=1 // pred_region
      %36 = dma.done [#allocation4], 256
    $region13: #{tpu_custom_call.1} parent=1 // pred_fallthru
      _
    // Predicated region
    $region14: #{tpu_custom_call.1} parent=1 // pred_check
      _
    $region15: #{tpu_custom_call.1} parent=1 // pred_check_branch
      %38 = sbr.rel (0) target = $region17
    $region16: #{tpu_custom_call.1} parent=1 // pred_region
      %39 = dma.done [#allocation7], 512
    $region17: #{tpu_custom_call.1} parent=1 // pred_fallthru
      _
    %p40 = scmp.eq.s32.totalorder 0, 0
    // Predicated region
    $region18: #{tpu_custom_call.1} parent=1 // pred_check
      %p41 = pneg %p40
    $region19: #{tpu_custom_call.1} parent=1 // pred_check_branch
      %43 = sbr.rel (%p41) target = $region21
    $region20: #{tpu_custom_call.1} parent=1 // pred_region
      %vm44 = vcmask 261120
      %45 = vst.msk [vmem:[#allocation2] sm:$0xff] %vm44, 0.0
      %46 = vst.msk [vmem:[#allocation2 + $0x8] sm:$0xff] %vm44, 0.0
    $region21: #{tpu_custom_call.1} parent=1 // pred_fallthru
      _
    %v47 = vld [vmem:[#allocation2] sm:$0xff]
    %v48 = vld [vmem:[#allocation2 + $0x8] sm:$0xff]
    %v49 = vld [vmem:[#allocation3] sm:$0xff]
    %v50 = vld [vmem:[#allocation3 + $0x8] sm:$0xff]
    %v51 = vld [vmem:[#allocation6] sm:$0xff]
    %v52 = vld [vmem:[#allocation6 + $0x8] sm:$0xff]
    %v53 = vld [vmem:[#allocation6 + $0x10] sm:$0xff]
    %v54 = vld [vmem:[#allocation6 + $0x18] sm:$0xff]
    %vm55 = vcmask 261120
    %v57 = vsel %vm55, %v49, 0
    %v60 = vsel %vm55, %v50, 0
    %62 = vmatprep.subr.mxu0 0.0
    %63 = vmatpush1.msra.mxu0 %v51
    %64 = vmatprep.subr.mxu0 0.0
    %65 = vmatpush1.msra.mxu0 %v52
    %66 = vmatprep.subr.mxu0 0.0
    %67 = vmatpush1.msra.mxu0 %v53
    %68 = vmatprep.subr.mxu0 0.0
    %69 = vmatpush1.msra.mxu0 %v54
    %70 = vmatprep.subr.mxu0 0.0
    %71 = vmatpush1.msra.mxu0 0.0
    %72 = vmatprep.subr.mxu0 0.0
    %73 = vmatpush1.msra.mxu0 0.0
    %74 = vmatprep.subr.mxu0 0.0
    %75 = vmatpush1.msra.mxu0 0.0
    %76 = vmatprep.subr.mxu0 0.0
    %77 = vmatpush1.msra.mxu0 0.0
    %78 = vmatprep.subr.mxu0 0.0
    %79 = vmatpush1.msra.mxu0 0.0
    %80 = vmatprep.subr.mxu0 0.0
    %81 = vmatpush1.msra.mxu0 0.0
    %82 = vmatprep.subr.mxu0 0.0
    %83 = vmatpush1.msra.mxu0 0.0
    %84 = vmatprep.subr.mxu0 0.0
    %85 = vmatpush1.msra.mxu0 0.0
    %86 = vmatprep.subr.mxu0 0.0
    %87 = vmatpush1.msra.mxu0 0.0
    %88 = vmatprep.subr.mxu0 0.0
    %89 = vmatpush1.msra.mxu0 0.0
    %90 = vmatprep.subr.mxu0 0.0
    %91 = vmatpush1.msra.mxu0 0.0
    %92 = vmatprep.subr.mxu0 0.0
    %93 = vmatpush1.msra.mxu0 0.0
    %94 = vmatprep.subr.mxu0 0.0
    %95 = vmatpush1.msra.mxu0 0.0
    %96 = vmatprep.subr.mxu0 0.0
    %97 = vmatpush1.msra.mxu0 0.0
    %98 = vmatprep.subr.mxu0 0.0
    %99 = vmatpush1.msra.mxu0 0.0
    %100 = vmatprep.subr.mxu0 0.0
    %101 = vmatpush1.msra.mxu0 0.0
    %102 = vmatprep.subr.mxu0 0.0
    %103 = vmatpush1.msra.mxu0 0.0
    %104 = vmatprep.subr.mxu0 0.0
    %105 = vmatpush1.msra.mxu0 0.0
    %106 = vmatprep.subr.mxu0 0.0
    %107 = vmatpush1.msra.mxu0 0.0
    %108 = vmatprep.subr.mxu0 0.0
    %109 = vmatpush1.msra.mxu0 0.0
    %110 = vmatprep.subr.mxu0 0.0
    %111 = vmatpush1.msra.mxu0 0.0
    %112 = vmatprep.subr.mxu0 0.0
    %113 = vmatpush1.msra.mxu0 0.0
    %114 = vmatprep.subr.mxu0 0.0
    %115 = vmatpush1.msra.mxu0 0.0
    %116 = vmatprep.subr.mxu0 0.0
    %117 = vmatpush1.msra.mxu0 0.0
    %118 = vmatprep.subr.mxu0 0.0
    %119 = vmatpush1.msra.mxu0 0.0
    %120 = vmatprep.subr.mxu0 0.0
    %121 = vmatpush1.msra.mxu0 0.0
    %122 = vmatprep.subr.mxu0 0.0
    %123 = vmatpush1.msra.mxu0 0.0
    %124 = vmatprep.subr.mxu0 0.0
    %125 = vmatpush1.msra.mxu0 0.0
    %126 = vmatprep.mubr.f32.mxu0 0.0
    %127 = vmatmul.mubr.f32.gmra.mrb[0].mxu0 %v57
    %v128 = vpop.f32.mrb[0].mxu0
    %v129 = vadd.f32 0.0, %v128
    %v130 = vpop.f32.mrb[0].mxu0
    %131 = vmatprep.mubr.f32.mxu0 0.0
    %132 = vmatmul.mubr.f32.gmra.mrb[0].mxu0 %v60
    %v133 = vpop.f32.mrb[0].mxu0
    %v134 = vadd.f32 0.0, %v133
    %v135 = vpop.f32.mrb[0].mxu0
    %136 = vdwg.mxu0
    %v137 = vadd.f32 %v47, %v129
    %v138 = vadd.f32 %v48, %v134
    %139 = vst.msk [vmem:[#allocation2] sm:$0xff] %vm55, %v137
    %140 = vst.msk [vmem:[#allocation2 + $0x8] sm:$0xff] %vm55, %v138
    // Predicated region
    $region22: #{tpu_custom_call.1} parent=1 // pred_check
      %p141 = pneg %p40
    $region23: #{tpu_custom_call.1} parent=1 // pred_check_branch
      %143 = sbr.rel (%p141) target = $region25
    $region24: #{tpu_custom_call.1} parent=1 // pred_region
      %v144 = vld [vmem:[#allocation2] sm:$0xff]
      %v145 = vld [vmem:[#allocation2 + $0x8] sm:$0xff]
      %146 = vst.msk [vmem:[#allocation8] sm:$0xff] %vm55, %v144
      %147 = vst.msk [vmem:[#allocation8 + $0x8] sm:$0xff] %vm55, %v145
    $region25: #{tpu_custom_call.1} parent=1 // pred_fallthru
      _
    // Predicated region
    $region26: #{tpu_custom_call.1} parent=1 // pred_check
      _
    $region27: #{tpu_custom_call.1} parent=1 // pred_check_branch
      %149 = sbr.rel (0) target = $region29
    $region28: #{tpu_custom_call.1} parent=1 // pred_region
      %s151 = ssub.s32 256, 256
      %152 = vsyncadd [#allocation5], %s151
      %s153 = sshll.u32 [#allocation8], 4
      %s154 = int_to_ptr.vmem [resolvable:$true] %s153
      %159 = dma.vmem_to_hbm [thread:$0]  %s154, 256, %s2, [#allocation5], 128, 128, 8
    $region29: #{tpu_custom_call.1} parent=1 // pred_fallthru
      _
    // Predicated region
    $region30: #{tpu_custom_call.1} parent=1 // pred_check
      _
    $region31: #{tpu_custom_call.1} parent=1 // pred_check_branch
      %161 = sbr.rel (0) target = $region33
    $region32: #{tpu_custom_call.1} parent=1 // pred_region
      %162 = dma.done [#allocation5], 256
    $region33: #{tpu_custom_call.1} parent=1 // pred_fallthru
      _
    %163 = vsyncpa [#allocation4], 1
    %164 = vsyncpa [#allocation7], 1
    %165 = vsyncpa [#allocation5], 1

</llo_original>
